<compile_context>
chip_gen: v7x
topology: tpu7x:2x2x1
jax: 0.10.0
libtpu: 0.0.40
codegen_flags: <defaults>
</compile_context>

<pallas_src>
import functools

import jax
import jax.numpy as jnp
from jax import lax
from jax.experimental import pallas as pl
from jax.experimental.pallas import tpu as pltpu

LANES = 128
SUBLANES = 8
MAX_TILE_ROWS = 8192                  # ~4 MiB per f32 input tile
VMEM_LIMIT_BYTES = 32 * 1024 * 1024   # 2 inputs x 2 buffers x 4 MiB = 16 MiB << 32 MiB


def _round_up(x: int, m: int) -> int:
    return ((x + m - 1) // m) * m


def _num_tensorcores_per_chip() -> int:
    """v7x has 2 TensorCores per chip; v5e/v6e have 1.  Defaults to 1."""
    try:
        kind = jax.devices()[0].device_kind.lower()
    except Exception:
        return 1
    return 2 if ("v7" in kind or "7x" in kind) else 1


def _wmse_kernel(pred_ref, act_ref, out_ref, acc_ref, *,
                 tile_rows, steps_per_shard, valid_rows, n_elems, weight_fp):
    s = pl.program_id(0)   # shard axis (parallel; size 1 on single-TC chips)
    j = pl.program_id(1)   # step within shard (reduction)

    @pl.when(j == 0)
    def _():
        acc_ref[...] = jnp.zeros_like(acc_ref)

    # Logical (unclamped) block index for this step; used only for masking.
    g = s * steps_per_shard + j
    row0 = g * tile_rows
    fully_valid = row0 + tile_rows <= valid_rows

    w_scale = jnp.float32(1.0 + weight_fp)

    def _accumulate(diff):
        # diff^2 + w*min(diff,0)^2  ==  diff^2 * (1+w if diff<0 else 1)
        contrib = (diff * diff) * jnp.where(diff < 0.0, w_scale, jnp.float32(1.0))
        # VPU-only tree accumulation into the (8,128) vreg accumulator; the
        # expensive cross-lane reduce is deferred to the wrapper epilogue.
        acc_ref[...] += jnp.sum(contrib.reshape(-1, SUBLANES, LANES), axis=0)

    # Fast path: steady-state full blocks, no mask / iota at all.
    @pl.when(fully_valid)
    def _():
        _accumulate(act_ref[...].astype(jnp.float32)
                    - pred_ref[...].astype(jnp.float32))

    # Slow path: ragged tail block and clamped duplicate blocks.
    @pl.when(jnp.logical_not(fully_valid))
    def _():
        row_ids = row0 + lax.broadcasted_iota(jnp.int32, (tile_rows, 1), 0)
        valid = row_ids < valid_rows
        diff = act_ref[...].astype(jnp.float32) - pred_ref[...].astype(jnp.float32)
        # Select on diff (not multiply-by-mask): out-of-range rows may hold
        # garbage (possibly NaN/inf) and 0*NaN would poison the sum.
        _accumulate(jnp.where(valid, diff, jnp.float32(0.0)))

    @pl.when(j == pl.num_programs(1) - 1)
    def _():
        # Per-shard partial, already normalized by the true element count.
        out_ref[...] = acc_ref[...] * jnp.float32(1.0 / n_elems)


def weighted_mse_loss(pred: jax.Array, actual: jax.Array,
                      weight_fp: float = 9.0) -> jax.Array:
    assert pred.shape == actual.shape, "pred/actual must have identical shapes"
    n_elems = pred.size
    assert n_elems > 0

    # Flatten to a lane-dense (rows, 128) view, keeping the original dtype.
    flat_p = pred.reshape(-1)
    flat_a = actual.reshape(-1)
    rem = flat_p.size % LANES
    if rem:
        # Rare fallback (costs one extra copy of each input): pad to the next
        # lane multiple with zeros, which contribute exactly 0 to both terms.
        pad = LANES - rem
        flat_p = jnp.pad(flat_p, (0, pad))
        flat_a = jnp.pad(flat_a, (0, pad))
    rows = flat_p.size // LANES
    p2d = flat_p.reshape(rows, LANES)
    a2d = flat_a.reshape(rows, LANES)

    # Tile choice: as large as possible (bandwidth), balanced across blocks so
    # the last block is never mostly-garbage, and a multiple of 8 sublanes.
    if rows <= MAX_TILE_ROWS:
        tile_rows = _round_up(rows, SUBLANES)
    else:
        nblk = pl.cdiv(rows, MAX_TILE_ROWS)
        tile_rows = _round_up(pl.cdiv(rows, nblk), SUBLANES)
    num_blocks = pl.cdiv(rows, tile_rows)

    # Shard across TensorCores only where there are 2 of them (v7x); on
    # single-TC chips the shard axis would just be duplicated DMA + overhead.
    num_shards = 2 if (_num_tensorcores_per_chip() >= 2 and num_blocks >= 2) else 1
    steps_per_shard = pl.cdiv(num_blocks, num_shards)

    def in_map(s, j):
        # Clamp so a fully-out-of-range step re-reads the last block; its
        # contribution is zeroed by the in-kernel row mask (slow path).
        return (jnp.minimum(s * steps_per_shard + j, num_blocks - 1), 0)

    kernel = functools.partial(
        _wmse_kernel,
        tile_rows=tile_rows,
        steps_per_shard=steps_per_shard,
        valid_rows=rows,
        n_elems=n_elems,
        weight_fp=float(weight_fp),
    )

    partials = pl.pallas_call(
        kernel,
        out_shape=jax.ShapeDtypeStruct((num_shards, SUBLANES, LANES), jnp.float32),
        grid_spec=pltpu.PrefetchScalarGridSpec(
            num_scalar_prefetch=0,
            grid=(num_shards, steps_per_shard),
            in_specs=[
                pl.BlockSpec((tile_rows, LANES), in_map),
                pl.BlockSpec((tile_rows, LANES), in_map),
            ],
            # Lane-dense per-shard partial accumulators (leading dim squeezed).
            out_specs=pl.BlockSpec((None, SUBLANES, LANES), lambda s, j: (s, 0, 0)),
            scratch_shapes=[pltpu.VMEM((SUBLANES, LANES), jnp.float32)],
        ),
        compiler_params=pltpu.CompilerParams(
            dimension_semantics=("parallel", "arbitrary"),
            vmem_limit_bytes=VMEM_LIMIT_BYTES,
        ),
    )(p2d, a2d)

    # Tiny epilogue: one cross-lane reduce over the normalized partials.
    return jnp.sum(partials)


def _reference(pred, actual, weight_fp=9.0):
    diff = actual.astype(jnp.float32) - pred.astype(jnp.float32)
    squared_loss = jnp.mean(diff ** 2)
    false_positives = jnp.minimum(diff, 0.0)
    return squared_loss + jnp.mean(false_positives ** 2) * weight_fp


if __name__ == "__main__":
    key = jax.random.PRNGKey(0)
    k1, k2 = jax.random.split(key)
    shape = (2, 4, 16, 16)  # (B, C, H, W), PyTorch-style
    pred = jax.random.normal(k1, shape, dtype=jnp.float32)
    actual = jax.random.normal(k2, shape, dtype=jnp.float32)

    loss = weighted_mse_loss(pred, actual, weight_fp=9.0)
    loss = jax.block_until_ready(loss)

    ref = _reference(pred, actual, weight_fp=9.0)
    assert jnp.allclose(loss, ref, rtol=1e-5, atol=1e-5), (loss, ref)
    print("KERNEL_OK")
</pallas_src>

<mosaic_0001>
module attributes {stable_mosaic.version = 11 : i64} {
  func.func @_wmse_kernel(%arg0: i32, %arg1: i32, %arg2: memref<16x128xf32, #tpu.memory_space<vmem>>, %arg3: memref<16x128xf32, #tpu.memory_space<vmem>>, %arg4: memref<1x8x128xf32, #tpu.memory_space<vmem>>, %arg5: memref<8x128xf32, #tpu.memory_space<vmem>>) attributes {dimension_semantics = [#tpu.dimension_semantics<parallel>, #tpu.dimension_semantics<arbitrary>], iteration_bounds = array<i64: 1, 1>, scalar_prefetch = 0 : i64, scratch_operands = 1 : i64, tpu.core_type = #tpu.core_type<tc>, window_params = [{transform_indices = @transform_0, window_bounds = array<i64: 16, 128>}, {transform_indices = @transform_1, window_bounds = array<i64: 16, 128>}, {transform_indices = @transform_2, window_bounds = array<i64: 1, 8, 128>}]} {
    %c0_i32 = arith.constant 0 : i32
    %0 = arith.cmpi eq, %arg1, %c0_i32 : i32
    %1 = arith.extui %0 : i1 to i32
    %c0_i32_0 = arith.constant 0 : i32
    %2 = arith.cmpi ne, %1, %c0_i32_0 : i32
    scf.if %2 {
      %cst_8 = arith.constant 0.000000e+00 : f32
      %16 = vector.broadcast %cst_8 : f32 to vector<8x128xf32>
      %c0 = arith.constant 0 : index
      %c0_9 = arith.constant 0 : index
      %17 = vector.load %arg5[%c0, %c0_9] : memref<8x128xf32, #tpu.memory_space<vmem>>, vector<8x128xf32>
      tpu.vector_store %arg5[%c0, %c0_9], %16 {strides = array<i32>} : memref<8x128xf32, #tpu.memory_space<vmem>>, vector<8x128xf32>,
    } else {
    }
    %c1_i32 = arith.constant 1 : i32
    %3 = arith.muli %arg0, %c1_i32 : i32
    %4 = arith.addi %3, %arg1 : i32
    %c16_i32 = arith.constant 16 : i32
    %5 = arith.muli %4, %c16_i32 : i32
    %c16_i32_1 = arith.constant 16 : i32
    %6 = arith.addi %5, %c16_i32_1 : i32
    %c16_i32_2 = arith.constant 16 : i32
    %7 = arith.cmpi sle, %6, %c16_i32_2 : i32
    %8 = arith.extui %7 : i1 to i32
    %cst = arith.constant 1.000000e+01 : f32
    %c0_i32_3 = arith.constant 0 : i32
    %9 = arith.cmpi ne, %8, %c0_i32_3 : i32
    scf.if %9 {
      %c0 = arith.constant 0 : index
      %c0_8 = arith.constant 0 : index
      %16 = vector.load %arg3[%c0, %c0_8] : memref<16x128xf32, #tpu.memory_space<vmem>>, vector<16x128xf32>
      %c0_9 = arith.constant 0 : index
      %c0_10 = arith.constant 0 : index
      %17 = vector.load %arg2[%c0_9, %c0_10] : memref<16x128xf32, #tpu.memory_space<vmem>>, vector<16x128xf32>
      %18 = arith.subf %16, %17 : vector<16x128xf32>
      %19 = arith.mulf %18, %18 : vector<16x128xf32>
      %cst_11 = arith.constant 0.000000e+00 : f32
      %20 = vector.broadcast %cst_11 : f32 to vector<16x128xf32>
      %21 = arith.cmpf olt, %18, %20 : vector<16x128xf32>
      %cst_12 = arith.constant 1.000000e+00 : f32
      %22 = vector.broadcast %cst : f32 to vector<16x128xf32>
      %23 = vector.broadcast %cst_12 : f32 to vector<16x128xf32>
      %24 = arith.select %21, %22, %23 : vector<16x128xi1>, vector<16x128xf32>
      %25 = arith.mulf %19, %24 : vector<16x128xf32>
      %c0_13 = arith.constant 0 : index
      %c0_14 = arith.constant 0 : index
      %26 = vector.load %arg5[%c0_13, %c0_14] : memref<8x128xf32, #tpu.memory_space<vmem>>, vector<8x128xf32>
      %27 = vector.shape_cast %25 : vector<16x128xf32> to vector<2x8x128xf32>
      %cst_15 = arith.constant dense<0.000000e+00> : vector<8x128xf32>
      %28 = vector.multi_reduction <add>, %27, %cst_15 [0] : vector<2x8x128xf32> to vector<8x128xf32>
      %29 = arith.addf %26, %28 : vector<8x128xf32>
      %c0_16 = arith.constant 0 : index
      %c0_17 = arith.constant 0 : index
      %30 = vector.load %arg5[%c0_16, %c0_17] : memref<8x128xf32, #tpu.memory_space<vmem>>, vector<8x128xf32>
      tpu.vector_store %arg5[%c0_16, %c0_17], %29 {strides = array<i32>} : memref<8x128xf32, #tpu.memory_space<vmem>>, vector<8x128xf32>,
    } else {
    }
    %true = arith.constant true
    %10 = arith.xori %7, %true : i1
    %11 = arith.extui %10 : i1 to i32
    %cst_4 = arith.constant 1.000000e+01 : f32
    %c0_i32_5 = arith.constant 0 : i32
    %12 = arith.cmpi ne, %11, %c0_i32_5 : i32
    scf.if %12 {
      %16 = tpu.iota {dimensions = array<i32: 0>} : vector<16x1xi32>
      %17 = vector.broadcast %5 : i32 to vector<16x1xi32>
      %18 = arith.addi %17, %16 : vector<16x1xi32>
      %c16_i32_8 = arith.constant 16 : i32
      %19 = vector.broadcast %c16_i32_8 : i32 to vector<16x1xi32>
      %20 = arith.cmpi slt, %18, %19 : vector<16x1xi32>
      %c0 = arith.constant 0 : index
      %c0_9 = arith.constant 0 : index
      %21 = vector.load %arg3[%c0, %c0_9] : memref<16x128xf32, #tpu.memory_space<vmem>>, vector<16x128xf32>
      %c0_10 = arith.constant 0 : index
      %c0_11 = arith.constant 0 : index
      %22 = vector.load %arg2[%c0_10, %c0_11] : memref<16x128xf32, #tpu.memory_space<vmem>>, vector<16x128xf32>
      %23 = arith.subf %21, %22 : vector<16x128xf32>
      %cst_12 = arith.constant 0.000000e+00 : f32
      %24 = vector.shape_cast %20 : vector<16x1xi1> to vector<16x1xi1>
      %25 = vector.broadcast %24 : vector<16x1xi1> to vector<16x128xi1>
      %26 = vector.broadcast %cst_12 : f32 to vector<16x128xf32>
      %27 = arith.select %25, %23, %26 : vector<16x128xi1>, vector<16x128xf32>
      %28 = arith.mulf %27, %27 : vector<16x128xf32>
      %cst_13 = arith.constant 0.000000e+00 : f32
      %29 = vector.broadcast %cst_13 : f32 to vector<16x128xf32>
      %30 = arith.cmpf olt, %27, %29 : vector<16x128xf32>
      %cst_14 = arith.constant 1.000000e+00 : f32
      %31 = vector.broadcast %cst_4 : f32 to vector<16x128xf32>
      %32 = vector.broadcast %cst_14 : f32 to vector<16x128xf32>
      %33 = arith.select %30, %31, %32 : vector<16x128xi1>, vector<16x128xf32>
      %34 = arith.mulf %28, %33 : vector<16x128xf32>
      %c0_15 = arith.constant 0 : index
      %c0_16 = arith.constant 0 : index
      %35 = vector.load %arg5[%c0_15, %c0_16] : memref<8x128xf32, #tpu.memory_space<vmem>>, vector<8x128xf32>
      %36 = vector.shape_cast %34 : vector<16x128xf32> to vector<2x8x128xf32>
      %cst_17 = arith.constant dense<0.000000e+00> : vector<8x128xf32>
      %37 = vector.multi_reduction <add>, %36, %cst_17 [0] : vector<2x8x128xf32> to vector<8x128xf32>
      %38 = arith.addf %35, %37 : vector<8x128xf32>
      %c0_18 = arith.constant 0 : index
      %c0_19 = arith.constant 0 : index
      %39 = vector.load %arg5[%c0_18, %c0_19] : memref<8x128xf32, #tpu.memory_space<vmem>>, vector<8x128xf32>
      tpu.vector_store %arg5[%c0_18, %c0_19], %38 {strides = array<i32>} : memref<8x128xf32, #tpu.memory_space<vmem>>, vector<8x128xf32>,
    } else {
    }
    %c0_i32_6 = arith.constant 0 : i32
    %13 = arith.cmpi eq, %arg1, %c0_i32_6 : i32
    %14 = arith.extui %13 : i1 to i32
    %c0_i32_7 = arith.constant 0 : i32
    %15 = arith.cmpi ne, %14, %c0_i32_7 : i32
    scf.if %15 {
      %c0 = arith.constant 0 : index
      %c0_8 = arith.constant 0 : index
      %16 = vector.load %arg5[%c0, %c0_8] : memref<8x128xf32, #tpu.memory_space<vmem>>, vector<8x128xf32>
      %cst_9 = arith.constant 4.8828125E-4 : f32
      %17 = vector.broadcast %cst_9 : f32 to vector<8x128xf32>
      %18 = arith.mulf %16, %17 : vector<8x128xf32>
      %c0_10 = arith.constant 0 : index
      %c0_11 = arith.constant 0 : index
      %c0_12 = arith.constant 0 : index
      %19 = vector.load %arg4[%c0_10, %c0_11, %c0_12] : memref<1x8x128xf32, #tpu.memory_space<vmem>>, vector<1x8x128xf32>
      %20 = vector.shape_cast %19 : vector<1x8x128xf32> to vector<8x128xf32>
      %21 = vector.shape_cast %18 : vector<8x128xf32> to vector<1x8x128xf32>
      tpu.vector_store %arg4[%c0_10, %c0_11, %c0_12], %21 {strides = array<i32>} : memref<1x8x128xf32, #tpu.memory_space<vmem>>, vector<1x8x128xf32>,
    } else {
    }
    return
  }
  func.func @transform_0(%arg0: i32, %arg1: i32) -> (i32, i32) {
    %c1_i32 = arith.constant 1 : i32
    %0 = arith.muli %arg0, %c1_i32 : i32
    %1 = arith.addi %0, %arg1 : i32
    %c0_i32 = arith.constant 0 : i32
    %2 = arith.minsi %1, %c0_i32 : i32
    %c0_i32_0 = arith.constant 0 : i32
    %c0_i32_1 = arith.constant 0 : i32
    return %2, %c0_i32_0 : i32, i32
  }
  func.func @transform_1(%arg0: i32, %arg1: i32) -> (i32, i32) {
    %c1_i32 = arith.constant 1 : i32
    %0 = arith.muli %arg0, %c1_i32 : i32
    %1 = arith.addi %0, %arg1 : i32
    %c0_i32 = arith.constant 0 : i32
    %2 = arith.minsi %1, %c0_i32 : i32
    %c0_i32_0 = arith.constant 0 : i32
    %c0_i32_1 = arith.constant 0 : i32
    return %2, %c0_i32_0 : i32, i32
  }
  func.func @transform_2(%arg0: i32, %arg1: i32) -> (i32, i32, i32) {
    %c0_i32 = arith.constant 0 : i32
    %c0_i32_0 = arith.constant 0 : i32
    %c0_i32_1 = arith.constant 0 : i32
    return %arg0, %c0_i32, %c0_i32_0 : i32, i32, i32
  }
}

</mosaic_0001>

<llo_original>
// kernel: tpu_custom_call.1
$region0: #{tpu_custom_call.1}
  #allocation0 [shape = 'u32[]', space=smem, size = 0x4, offset = 0x4, fixed_abs, tag = 'smem constant byte address 0x4 - core index']
  #allocation1 [shape = 'u32[144,128]{1,0:T(1,128)}', space=vmem, size = 0x12000, scoped, tag = 'internal scratch']
  #allocation2 [shape = 'f32[8,128]{1,0:T(8,128)}', space=vmem, size = 0x1000, scoped, tag = 'scratch operand']
  %s0 = inlined_call_operand.hbm [shape: f32[16,128], index: 0, kind: input, shape index: {}]
  %s1 = inlined_call_operand.hbm [shape: f32[16,128], index: 1, kind: input, shape index: {}]
  %s2 = inlined_call_operand.hbm [shape: f32[1,8,128], index: 2, kind: output, shape index: {}]
  %s3 = sld [smem:[#allocation0]]
  $region42: #{tpu_custom_call.1} parent=0
    _
  %s5 = ssub.s32 1, %s3
  %s6 = scalar_select 0, %s5, %s3
  $region1: #{tpu_custom_call.1} parent=0
    #allocation3 [shape = 'u8[8192]{0}', space=vmem, size = 0x2000, scoped, tag = 'input window, operand 0, single buffered']
    #allocation4 [shape = 's32[1]{0}', space=sflag, size = 0x4, scoped, tag = 'scoped memory for tpu_custom_call.1']
    #allocation5 [shape = 's32[1]{0}', space=sflag, size = 0x4, scoped, tag = 'scoped memory for tpu_custom_call.1']
    #allocation6 [shape = 'u8[8192]{0}', space=vmem, size = 0x2000, scoped, tag = 'input window, operand 1, single buffered']
    #allocation7 [shape = 's32[1]{0}', space=sflag, size = 0x4, scoped, tag = 'scoped memory for tpu_custom_call.1']
    #allocation8 [shape = 'u8[4096]{0}', space=vmem, size = 0x1000, scoped, tag = 'output window, operand 0, single buffered']
    %7 = vsyncpa [#allocation4], 0
    %8 = vsyncpa [#allocation7], 0
    %9 = vsyncpa [#allocation5], 0
    // Predicated region
    $region2: #{tpu_custom_call.1} parent=1 // pred_check
      _
    $region3: #{tpu_custom_call.1} parent=1 // pred_check_branch
      %11 = sbr.rel (0) target = $region5
    $region4: #{tpu_custom_call.1} parent=1 // pred_region
      %s12 = sadd.s32 0, 0
      %p13 = scmp.lt.s32.totalorder %s12, 0
      %s14 = scalar_select %p13, %s12, 0
      %s15 = smul.u32 2, %s14
      %s17 = ssub.s32 256, 256
      %18 = vsyncadd [#allocation4], %s17
      %s19 = smul.addr %s15, 128
      %s20 = scalar_lea.hbm %s0, %s19
      %s21 = sshll.u32 [#allocation3], 4
      %s22 = int_to_ptr.vmem [resolvable:$true] %s21
      %27 = dma.hbm_to_vmem [thread:$0]  %s20, 256, %s22, [#allocation4], 128, 128, 8
    $region5: #{tpu_custom_call.1} parent=1 // pred_fallthru
      _
    // Predicated region
    $region6: #{tpu_custom_call.1} parent=1 // pred_check
      _
    $region7: #{tpu_custom_call.1} parent=1 // pred_check_branch
      %29 = sbr.rel (0) target = $region9
    $region8: #{tpu_custom_call.1} parent=1 // pred_region
      %s30 = sadd.s32 0, 0
      %p31 = scmp.lt.s32.totalorder %s30, 0
      %s32 = scalar_select %p31, %s30, 0
      %s33 = smul.u32 2, %s32
      %s35 = ssub.s32 256, 256
      %36 = vsyncadd [#allocation7], %s35
      %s37 = smul.addr %s33, 128
      %s38 = scalar_lea.hbm %s1, %s37
      %s39 = sshll.u32 [#allocation6], 4
      %s40 = int_to_ptr.vmem [resolvable:$true] %s39
      %45 = dma.hbm_to_vmem [thread:$0]  %s38, 256, %s40, [#allocation7], 128, 128, 8
    $region9: #{tpu_custom_call.1} parent=1 // pred_fallthru
      _
    // Predicated region
    $region10: #{tpu_custom_call.1} parent=1 // pred_check
      _
    $region11: #{tpu_custom_call.1} parent=1 // pred_check_branch
      %47 = sbr.rel (0) target = $region13
    $region12: #{tpu_custom_call.1} parent=1 // pred_region
      %48 = dma.done [#allocation4], 256
    $region13: #{tpu_custom_call.1} parent=1 // pred_fallthru
      _
    // Predicated region
    $region14: #{tpu_custom_call.1} parent=1 // pred_check
      _
    $region15: #{tpu_custom_call.1} parent=1 // pred_check_branch
      %50 = sbr.rel (0) target = $region17
    $region16: #{tpu_custom_call.1} parent=1 // pred_region
      %51 = dma.done [#allocation7], 256
    $region17: #{tpu_custom_call.1} parent=1 // pred_fallthru
      _
    %s52 = sadd.s32 0, 0
    %p53 = scmp.lt.s32.totalorder %s52, 0
    %s54 = scalar_select %p53, %s52, 0
    %s55 = smul.u32 2, %s54
    %s56 = sadd.s32 0, 0
    %p57 = scmp.lt.s32.totalorder %s56, 0
    %s58 = scalar_select %p57, %s56, 0
    %s59 = smul.u32 2, %s58
    %p60 = scmp.eq.s32.totalorder 0, 0
    // Predicated region
    $region18: #{tpu_custom_call.1} parent=1 // pred_check
      %p61 = pneg %p60
    $region19: #{tpu_custom_call.1} parent=1 // pred_check_branch
      %63 = sbr.rel (%p61) target = $region21
    $region20: #{tpu_custom_call.1} parent=1 // pred_region
      %64 = vst [vmem:[#allocation2] sm:$0xff] 0.0
    $region21: #{tpu_custom_call.1} parent=1 // pred_fallthru
      _
    %s65 = sadd.s32 0, 0
    %s66 = smul.u32 %s65, 16
    %s67 = sadd.s32 %s66, 16
    %p68 = scmp.le.s32.totalorder %s67, 16
    // Predicated region
    $region22: #{tpu_custom_call.1} parent=1 // pred_check
      %p69 = pneg %p68
    $region23: #{tpu_custom_call.1} parent=1 // pred_check_branch
      %71 = sbr.rel (%p69) target = $region25
    $region24: #{tpu_custom_call.1} parent=1 // pred_region
      %v72 = vld [vmem:[#allocation6] sm:$0xff]
      %v73 = vld [vmem:[#allocation6 + $0x8] sm:$0xff]
      %v74 = vld [vmem:[#allocation3] sm:$0xff]
      %v75 = vld [vmem:[#allocation3 + $0x8] sm:$0xff]
      %v76 = vsub.f32 %v72, %v74
      %v77 = vsub.f32 %v73, %v75
      %v78 = vmul.f32 %v76, %v76
      %v79 = vmul.f32 %v77, %v77
      %vm80 = vcmp.lt.f32.partialorder %v76, 0.0
      %vm81 = vcmp.lt.f32.partialorder %v77, 0.0
      %v82 = vsel %vm80, 10.0, 1.0
      %v83 = vsel %vm81, 10.0, 1.0
      %v84 = vmul.f32 %v78, %v82
      %v85 = vmul.f32 %v79, %v83
      %v86 = vld [vmem:[#allocation2] sm:$0xff]
      %v87 = vadd.f32 %v84, %v85
      %v88 = vadd.f32 %v86, %v87
      %89 = vst [vmem:[#allocation2] sm:$0xff] %v88
    $region25: #{tpu_custom_call.1} parent=1 // pred_fallthru
      _
    %p90 = pneg %p68
    // Predicated region
    $region26: #{tpu_custom_call.1} parent=1 // pred_check
      _
    $region27: #{tpu_custom_call.1} parent=1 // pred_check_branch
      %92 = sbr.rel (%p68) target = $region29
    $region28: #{tpu_custom_call.1} parent=1 // pred_region
      %v93 = vlaneseq
      %v94 = vshrl.u32 %v93, 7
      %v95 = vadd.s32 %v94, 8
      %v96 = vstv %s66
      %v97 = vadd.s32 %v96, %v94
      %v98 = vadd.s32 %v96, %v95
      %vm99 = vcmp.lt.s32.totalorder %v97, 16
      %vm100 = vcmp.lt.s32.totalorder %v98, 16
      %v101 = vld [vmem:[#allocation6] sm:$0xff]
      %v102 = vld [vmem:[#allocation6 + $0x8] sm:$0xff]
      %v103 = vld [vmem:[#allocation3] sm:$0xff]
      %v104 = vld [vmem:[#allocation3 + $0x8] sm:$0xff]
      %v105 = vsub.f32 %v101, %v103
      %v106 = vsub.f32 %v102, %v104
      %v107 = vsel %vm99, 1, 0
      %v108 = vsel %vm100, 1, 0
      %vm109 = vcmp.eq.s32.totalorder %v107, 1
      %vm110 = vcmp.eq.s32.totalorder %v108, 1
      %v111 = vsel %vm109, %v105, 0.0
      %v112 = vsel %vm110, %v106, 0.0
      %v113 = vmul.f32 %v111, %v111
      %v114 = vmul.f32 %v112, %v112
      %vm115 = vcmp.lt.f32.partialorder %v111, 0.0
      %vm116 = vcmp.lt.f32.partialorder %v112, 0.0
      %v117 = vsel %vm115, 10.0, 1.0
      %v118 = vsel %vm116, 10.0, 1.0
      %v119 = vmul.f32 %v113, %v117
      %v120 = vmul.f32 %v114, %v118
      %v121 = vld [vmem:[#allocation2] sm:$0xff]
      %v122 = vadd.f32 %v119, %v120
      %v123 = vadd.f32 %v121, %v122
      %124 = vst [vmem:[#allocation2] sm:$0xff] %v123
    $region29: #{tpu_custom_call.1} parent=1 // pred_fallthru
      _
    // Predicated region
    $region30: #{tpu_custom_call.1} parent=1 // pred_check
      %p125 = pneg %p60
    $region31: #{tpu_custom_call.1} parent=1 // pred_check_branch
      %127 = sbr.rel (%p125) target = $region33
    $region32: #{tpu_custom_call.1} parent=1 // pred_region
      %v128 = vld [vmem:[#allocation2] sm:$0xff]
      %v129 = vmul.f32 %v128, 0.00048828125
      %130 = vst [vmem:[#allocation8] sm:$0xff] %v129
    $region33: #{tpu_custom_call.1} parent=1 // pred_fallthru
      _
    // Predicated region
    $region34: #{tpu_custom_call.1} parent=1 // pred_check
      _
    $region35: #{tpu_custom_call.1} parent=1 // pred_check_branch
      %132 = sbr.rel (0) target = $region37
    $region36: #{tpu_custom_call.1} parent=1 // pred_region
      %s134 = ssub.s32 128, 128
      %135 = vsyncadd [#allocation5], %s134
      %s137 = sshll.u32 [#allocation8], 4
      %s138 = int_to_ptr.vmem [resolvable:$true] %s137
      %140 = dma.vmem_to_hbm [thread:$0]  %s138, 128, %s2, [#allocation5]
    $region37: #{tpu_custom_call.1} parent=1 // pred_fallthru
      _
    // Predicated region
    $region38: #{tpu_custom_call.1} parent=1 // pred_check
      _
    $region39: #{tpu_custom_call.1} parent=1 // pred_check_branch
      %142 = sbr.rel (0) target = $region41
    $region40: #{tpu_custom_call.1} parent=1 // pred_region
      %143 = dma.done [#allocation5], 128
    $region41: #{tpu_custom_call.1} parent=1 // pred_fallthru
      _
    %144 = vsyncpa [#allocation4], 1
    %145 = vsyncpa [#allocation7], 1
    %146 = vsyncpa [#allocation5], 1

</llo_original>
